<compile_context>
chip_gen: v7x
topology: tpu7x:2x2x1
jax: 0.10.0
libtpu: 0.0.40
codegen_flags: <defaults>
</compile_context>

<pallas_src>
import jax
import jax.numpy as jnp
from jax.experimental import pallas as pl
from jax.experimental.pallas import tpu as pltpu


def _round_up(x, m):
    return ((x + m - 1) // m) * m


def combined_kernel(xt_ref, wt_ref, b_ref, wc_ref, bc_ref, out_ref):
    """Fused forward for one batch tile (batch lives on the lane axis).

      xt_ref : (K, TM)  bf16/f32   concat([master_in, llm_in], feat).T tile
      wt_ref : (Dh, K)  bf16/f32   block-diagonal encoder weight, transposed
      b_ref  : (Dh, 1)  f32        concat([bm, bl]) encoder bias column
      wc_ref : (Dh, 1)  f32        combined_layer weight column
      bc_ref : (1, 1)   f32        combined_layer bias (SMEM scalar)
      out_ref: (1, TM)  f32        lane-dense output row (one scalar per batch row)

    Math (per batch column):
      h   = relu(W_blockdiag.T @ x + b)        # == concat(master_enc, llm_enc)
      out = sum_d h[d] * wc[d] + bc            # == Linear(Dm+Dl, 1) on the concat
    """
    # Single fused MXU matmul (M=Dh, K=Dm_in+Dl_in, N=TM) with f32 accumulation.
    h = jnp.dot(wt_ref[...], xt_ref[...],
                preferred_element_type=jnp.float32)          # (Dh, TM) f32
    h = jnp.maximum(h + b_ref[...], 0.0)                      # f32 VPU epilogue

    # Final Linear(Dh, 1): VPU broadcast-multiply + XLU sublane reduce instead
    # of an N=1 MXU matmul (avoids full MXU push/drain for 1 output lane).
    out = jnp.sum(h * wc_ref[...], axis=0, keepdims=True) + bc_ref[0, 0]  # (1, TM)
    out_ref[...] = out.astype(out_ref.dtype)


def combined_model_forward(master_input, llm_input, params, *,
                           block_b=None, use_bf16=True):
    """One pallas_call over a parallel batch grid; lane-dense in/out layout."""
    B = master_input.shape[0]
    x = jnp.concatenate([master_input.astype(jnp.float32),
                         llm_input.astype(jnp.float32)], axis=1)       # (B, K)
    K = x.shape[1]
    wt, b_col, wc_col, bc = params["wt"], params["b"], params["wc"], params["bc"]
    Dh = wt.shape[0]
    assert wt.shape == (Dh, K)

    # Batch tile on lanes: multiple of 128; cap keeps double-buffered tiles
    # comfortably inside the v7x 64 MiB-physical / 32 MiB-scoped VMEM budget.
    TM = block_b if block_b is not None else min(1024, _round_up(B, 128))
    TM = _round_up(TM, 128)
    B_pad = _round_up(B, TM)
    n_tiles = B_pad // TM

    # Lane-dense (batch-on-lanes) layout; zero-pad batch to a tile multiple.
    xt = jnp.zeros((K, B_pad), jnp.float32).at[:, :B].set(x.T)

    mxu_dtype = jnp.bfloat16 if use_bf16 else jnp.float32
    xt = xt.astype(mxu_dtype)
    wt = wt.astype(mxu_dtype)

    out = pl.pallas_call(
        combined_kernel,
        out_shape=jax.ShapeDtypeStruct((n_tiles, TM), jnp.float32),
        grid=(n_tiles,),
        in_specs=[
            pl.BlockSpec((K, TM), lambda i: (0, i)),          # input tile
            pl.BlockSpec((Dh, K), lambda i: (0, 0)),          # fused weight (replicated)
            pl.BlockSpec((Dh, 1), lambda i: (0, 0)),          # encoder bias col
            pl.BlockSpec((Dh, 1), lambda i: (0, 0)),          # combined weight col
            pl.BlockSpec(memory_space=pltpu.MemorySpace.SMEM),  # bc scalar
        ],
        out_specs=pl.BlockSpec((1, TM), lambda i: (i, 0)),    # lane-dense output row
        compiler_params=pltpu.CompilerParams(
            dimension_semantics=("parallel",),
            vmem_limit_bytes=32 << 20),
    )(xt, wt, b_col, wc_col, bc)

    # (n_tiles, TM) row-major == batch order; strip padding, restore (B, 1).
    return out.reshape(B_pad, 1)[:B]


def init_params(key, dm_in, dm_out, dl_in, dl_out):
    """Deterministic parameter init; weights stored [in_features, out_features]."""
    ks = jax.random.split(key, 6)
    scale = 0.05
    wm = scale * jax.random.normal(ks[0], (dm_in, dm_out), jnp.float32)
    bm = scale * jax.random.normal(ks[1], (dm_out,), jnp.float32)
    wl = scale * jax.random.normal(ks[2], (dl_in, dl_out), jnp.float32)
    bl = scale * jax.random.normal(ks[3], (dl_out,), jnp.float32)
    # combined_layer = nn.Linear(dm_out + dl_out, 1)
    wc = scale * jax.random.normal(ks[4], (dm_out + dl_out, 1), jnp.float32)
    bc = scale * jax.random.normal(ks[5], (1, 1), jnp.float32)
    return {"wm": wm, "bm": bm, "wl": wl, "bl": bl, "wc": wc, "bc": bc}


def pack_params(p):
    """Pack per-branch weights into the fused kernel layout.

    Builds the block-diagonal encoder weight so both encoder matmuls become a
    single MXU pass; transposes to the batch-on-lanes orientation.
    """
    dm_in, dm_out = p["wm"].shape
    dl_in, dl_out = p["wl"].shape
    K, Dh = dm_in + dl_in, dm_out + dl_out
    w_bd = jnp.zeros((K, Dh), jnp.float32)
    w_bd = w_bd.at[:dm_in, :dm_out].set(p["wm"])
    w_bd = w_bd.at[dm_in:, dm_out:].set(p["wl"])
    b = jnp.concatenate([p["bm"], p["bl"]]).reshape(Dh, 1)
    return {
        "wt": w_bd.T,                      # (Dh, K)
        "b": b,                            # (Dh, 1)
        "wc": p["wc"].reshape(Dh, 1),      # (Dh, 1)
        "bc": p["bc"].reshape(1, 1),       # (1, 1) -> SMEM scalar
    }


def reference_forward(master_input, llm_input, params, *, use_bf16=True):
    """Pure-JAX reference (same bf16 operand rounding as the kernel's MXU path)."""
    if use_bf16:
        cast = lambda a: a.astype(jnp.bfloat16).astype(jnp.float32)
    else:
        cast = lambda a: a
    m = jnp.maximum(cast(master_input) @ cast(params["wm"]) + params["bm"], 0.0)
    l = jnp.maximum(cast(llm_input) @ cast(params["wl"]) + params["bl"], 0.0)
    combined = jnp.concatenate([m, l], axis=1)                       # (B, Dh)
    # Final Linear(Dh, 1) done elementwise in f32 to mirror the kernel epilogue.
    return jnp.sum(combined * params["wc"].reshape(1, -1),
                   axis=1, keepdims=True) + params["bc"].reshape(1, 1)


if __name__ == "__main__":
    key = jax.random.PRNGKey(0)
    k_in_m, k_in_l, k_p = jax.random.split(key, 3)

    # Small shapes: batch=8, master: 32 -> 16, llm: 32 -> 16, combined: 32 -> 1
    B, DM_IN, DM_OUT, DL_IN, DL_OUT = 8, 32, 16, 32, 16
    master_input = jax.random.normal(k_in_m, (B, DM_IN), jnp.float32)
    llm_input = jax.random.normal(k_in_l, (B, DL_IN), jnp.float32)

    params = init_params(k_p, DM_IN, DM_OUT, DL_IN, DL_OUT)
    kparams = pack_params(params)

    out = combined_model_forward(master_input, llm_input, kparams, use_bf16=True)
    out = jax.block_until_ready(out)

    ref = reference_forward(master_input, llm_input, params, use_bf16=True)
    assert out.shape == (B, 1), out.shape
    assert jnp.allclose(out, ref, atol=1e-3, rtol=1e-3), (out, ref)

    print("KERNEL_OK")
</pallas_src>

<mosaic_0001>
module attributes {stable_mosaic.version = 11 : i64} {
  func.func @combined_kernel(%arg0: i32, %arg1: memref<64x128xbf16, #tpu.memory_space<vmem>>, %arg2: memref<32x64xbf16, #tpu.memory_space<vmem>>, %arg3: memref<32x1xf32, #tpu.memory_space<vmem>>, %arg4: memref<32x1xf32, #tpu.memory_space<vmem>>, %arg5: memref<1x1xf32, #tpu.memory_space<smem>>, %arg6: memref<1x128xf32, #tpu.memory_space<vmem>>) attributes {dimension_semantics = [#tpu.dimension_semantics<parallel>], iteration_bounds = array<i64: 1>, scalar_prefetch = 0 : i64, scratch_operands = 0 : i64, tpu.core_type = #tpu.core_type<tc>, window_params = [{transform_indices = @transform_0, window_bounds = array<i64: 64, 128>}, {pipeline_mode = #tpu.pipeline_mode<synchronous>, transform_indices = @transform_1, window_bounds = array<i64: 32, 64>}, {pipeline_mode = #tpu.pipeline_mode<synchronous>, transform_indices = @transform_2, window_bounds = array<i64: 32, 1>}, {pipeline_mode = #tpu.pipeline_mode<synchronous>, transform_indices = @transform_3, window_bounds = array<i64: 32, 1>}, {transform_indices = @transform_4, window_bounds = array<i64: 1, 1>}, {transform_indices = @transform_5, window_bounds = array<i64: 1, 128>}]} {
    %c0 = arith.constant 0 : index
    %c0_0 = arith.constant 0 : index
    %0 = vector.load %arg2[%c0, %c0_0] : memref<32x64xbf16, #tpu.memory_space<vmem>>, vector<32x64xbf16>
    %c0_1 = arith.constant 0 : index
    %c0_2 = arith.constant 0 : index
    %1 = vector.load %arg1[%c0_1, %c0_2] : memref<64x128xbf16, #tpu.memory_space<vmem>>, vector<64x128xbf16>
    %cst = arith.constant dense<0.000000e+00> : vector<32x128xf32>
    %2 = tpu.matmul %0, %1, %cst {dimension_numbers = #tpu.dot_dimension_numbers<[1], [0], [0], [1], [0, 0, 1, 1], [], []>} : vector<32x64xbf16>, vector<64x128xbf16>, vector<32x128xf32> -> vector<32x128xf32>
    %c0_3 = arith.constant 0 : index
    %c0_4 = arith.constant 0 : index
    %3 = vector.load %arg3[%c0_3, %c0_4] : memref<32x1xf32, #tpu.memory_space<vmem>>, vector<32x1xf32>
    %4 = vector.broadcast %3 : vector<32x1xf32> to vector<32x128xf32>
    %5 = arith.addf %2, %4 : vector<32x128xf32>
    %cst_5 = arith.constant 0.000000e+00 : f32
    %6 = vector.broadcast %cst_5 : f32 to vector<32x128xf32>
    %7 = arith.maximumf %5, %6 : vector<32x128xf32>
    %c0_6 = arith.constant 0 : index
    %c0_7 = arith.constant 0 : index
    %8 = vector.load %arg4[%c0_6, %c0_7] : memref<32x1xf32, #tpu.memory_space<vmem>>, vector<32x1xf32>
    %9 = vector.broadcast %8 : vector<32x1xf32> to vector<32x128xf32>
    %10 = arith.mulf %7, %9 : vector<32x128xf32>
    %cst_8 = arith.constant dense<0.000000e+00> : vector<128xf32>
    %11 = vector.multi_reduction <add>, %10, %cst_8 [0] : vector<32x128xf32> to vector<128xf32>
    %12 = vector.shape_cast %11 : vector<128xf32> to vector<1x128xf32>
    %c0_9 = arith.constant 0 : index
    %c0_10 = arith.constant 0 : index
    %13 = memref.load %arg5[%c0_9, %c0_10] : memref<1x1xf32, #tpu.memory_space<smem>>
    %14 = vector.broadcast %13 : f32 to vector<1x128xf32>
    %15 = arith.addf %12, %14 : vector<1x128xf32>
    %c0_11 = arith.constant 0 : index
    %c0_12 = arith.constant 0 : index
    %16 = vector.load %arg6[%c0_11, %c0_12] : memref<1x128xf32, #tpu.memory_space<vmem>>, vector<1x128xf32>
    tpu.vector_store %arg6[%c0_11, %c0_12], %15 {strides = array<i32>} : memref<1x128xf32, #tpu.memory_space<vmem>>, vector<1x128xf32>,
    return
  }
  func.func @transform_0(%arg0: i32) -> (i32, i32) {
    %c0_i32 = arith.constant 0 : i32
    %c0_i32_0 = arith.constant 0 : i32
    return %c0_i32, %arg0 : i32, i32
  }
  func.func @transform_1(%arg0: i32) -> (i32, i32) {
    %c0_i32 = arith.constant 0 : i32
    %c0_i32_0 = arith.constant 0 : i32
    %c0_i32_1 = arith.constant 0 : i32
    return %c0_i32, %c0_i32_0 : i32, i32
  }
  func.func @transform_2(%arg0: i32) -> (i32, i32) {
    %c0_i32 = arith.constant 0 : i32
    %c0_i32_0 = arith.constant 0 : i32
    %c0_i32_1 = arith.constant 0 : i32
    return %c0_i32, %c0_i32_0 : i32, i32
  }
  func.func @transform_3(%arg0: i32) -> (i32, i32) {
    %c0_i32 = arith.constant 0 : i32
    %c0_i32_0 = arith.constant 0 : i32
    %c0_i32_1 = arith.constant 0 : i32
    return %c0_i32, %c0_i32_0 : i32, i32
  }
  func.func @transform_4(%arg0: i32) -> (i32, i32) {
    %c0_i32 = arith.constant 0 : i32
    %c0_i32_0 = arith.constant 0 : i32
    %c0_i32_1 = arith.constant 0 : i32
    return %c0_i32, %c0_i32_0 : i32, i32
  }
  func.func @transform_5(%arg0: i32) -> (i32, i32) {
    %c0_i32 = arith.constant 0 : i32
    %c0_i32_0 = arith.constant 0 : i32
    return %arg0, %c0_i32 : i32, i32
  }
}

</mosaic_0001>

<llo_original>
// kernel: tpu_custom_call.1
$region0: #{tpu_custom_call.1}
  #allocation0 [shape = 'u32[]', space=smem, size = 0x4, offset = 0x4, fixed_abs, tag = 'smem constant byte address 0x4 - core index']
  #allocation1 [shape = 'u32[144,128]{1,0:T(1,128)}', space=vmem, size = 0x12000, scoped, tag = 'internal scratch']
  #allocation2 [shape = 'f32[1,1]{1,0:T(1,128)S(6)}', space=smem, size = 0x200, scoped, tag = 'scoped memory for tpu_custom_call.1']
  %s0 = inlined_call_operand.vmem [shape: bf16[64,128], index: 0, kind: input, shape index: {}]
  %s1 = inlined_call_operand.vmem [shape: bf16[32,64], index: 1, kind: input, shape index: {}]
  %s2 = inlined_call_operand.vmem [shape: f32[32,1], index: 2, kind: input, shape index: {}]
  %s3 = inlined_call_operand.vmem [shape: f32[32,1], index: 3, kind: input, shape index: {}]
  %s4 = inlined_call_operand.<no memory space> [shape: f32[1,1], index: 4, kind: input, shape index: {}]
  %s5 = inlined_call_operand.hbm [shape: f32[1,128], index: 5, kind: output, shape index: {}]
  %s6 = sld [smem:[#allocation0]]
  $region30: #{tpu_custom_call.1} parent=0
    _
  %s8 = ssub.s32 1, %s6
  %s9 = scalar_select 0, %s8, %s6
  %10 = sst [smem:[#allocation2]] %s4
  $region1: #{tpu_custom_call.1} parent=0
    #allocation3 [shape = 'u8[512]{0}', space=vmem, size = 0x400, scoped, tag = 'output window, operand 0, single buffered']
    #allocation4 [shape = 's32[1]{0}', space=sflag, size = 0x4, scoped, tag = 'scoped memory for tpu_custom_call.1']
    %11 = vsyncpa [#allocation4], 0
    // Predicated region
    $region2: #{tpu_custom_call.1} parent=1 // pred_check
      _
    $region3: #{tpu_custom_call.1} parent=1 // pred_check_branch
      %13 = sbr.rel (0) target = $region5
    $region4: #{tpu_custom_call.1} parent=1 // pred_region
      _
    $region5: #{tpu_custom_call.1} parent=1 // pred_fallthru
      _
    // Predicated region
    $region6: #{tpu_custom_call.1} parent=1 // pred_check
      _
    $region7: #{tpu_custom_call.1} parent=1 // pred_check_branch
      %15 = sbr.rel (0) target = $region9
    $region8: #{tpu_custom_call.1} parent=1 // pred_region
      _
    $region9: #{tpu_custom_call.1} parent=1 // pred_fallthru
      _
    // Predicated region
    $region10: #{tpu_custom_call.1} parent=1 // pred_check
      _
    $region11: #{tpu_custom_call.1} parent=1 // pred_check_branch
      %17 = sbr.rel (0) target = $region13
    $region12: #{tpu_custom_call.1} parent=1 // pred_region
      _
    $region13: #{tpu_custom_call.1} parent=1 // pred_fallthru
      _
    // Predicated region
    $region14: #{tpu_custom_call.1} parent=1 // pred_check
      _
    $region15: #{tpu_custom_call.1} parent=1 // pred_check_branch
      %19 = sbr.rel (0) target = $region17
    $region16: #{tpu_custom_call.1} parent=1 // pred_region
      _
    $region17: #{tpu_custom_call.1} parent=1 // pred_fallthru
      _
    // Predicated region
    $region18: #{tpu_custom_call.1} parent=1 // pred_check
      _
    $region19: #{tpu_custom_call.1} parent=1 // pred_check_branch
      %21 = sbr.rel (0) target = $region21
    $region20: #{tpu_custom_call.1} parent=1 // pred_region
      _
    $region21: #{tpu_custom_call.1} parent=1 // pred_fallthru
      _
    %v23 = vld [vmem:[%s1] sm:$0xf]
    %v24 = vld [vmem:[%s1 + $0x4] sm:$0xf]
    %v25 = vld [vmem:[%s1 + $0x8] sm:$0xf]
    %v26 = vld [vmem:[%s1 + $0xc] sm:$0xf]
    %v27 = vld [vmem:[%s0] sm:$0xf]
    %v28 = vld [vmem:[%s0 + $0x4] sm:$0xf]
    %v29 = vld [vmem:[%s0 + $0x8] sm:$0xf]
    %v30 = vld [vmem:[%s0 + $0xc] sm:$0xf]
    %v31 = vld [vmem:[%s0 + $0x10] sm:$0xf]
    %v32 = vld [vmem:[%s0 + $0x14] sm:$0xf]
    %v33 = vld [vmem:[%s0 + $0x18] sm:$0xf]
    %v34 = vld [vmem:[%s0 + $0x1c] sm:$0xf]
    %v35 = vld [vmem:[%s2] sm:$0xff]
    %v36 = vld [vmem:[%s2 + $0x8] sm:$0xff]
    %v37 = vld [vmem:[%s2 + $0x10] sm:$0xff]
    %v38 = vld [vmem:[%s2 + $0x18] sm:$0xff]
    %40 = vset.pattern.permute.xlu0 0
    %41 = vperm.xlu0 %40, %v35
    %v42 = vpop.permute.xlu0 %41
    %45 = vset.pattern.permute.xlu0 0
    %46 = vperm.xlu0 %45, %v36
    %v47 = vpop.permute.xlu0 %46
    %50 = vset.pattern.permute.xlu0 0
    %51 = vperm.xlu0 %50, %v37
    %v52 = vpop.permute.xlu0 %51
    %55 = vset.pattern.permute.xlu0 0
    %56 = vperm.xlu0 %55, %v38
    %v57 = vpop.permute.xlu0 %56
    %v63 = vunpack.c.l.b16 %v23
    %v64 = vunpack.c.l.b16 %v24
    %v65 = vunpack.c.l.b16 %v25
    %v66 = vunpack.c.l.b16 %v26
    %v67 = vpack.c.b16 %v64, %v63
    %v68 = vpack.c.b16 %v66, %v65
    %v77 = vunpack.c.l.b16 %v27
    %v78 = vunpack.c.l.b16 %v28
    %v79 = vunpack.c.l.b16 %v29
    %v80 = vunpack.c.l.b16 %v30
    %v81 = vunpack.c.l.b16 %v31
    %v82 = vunpack.c.l.b16 %v32
    %v83 = vunpack.c.l.b16 %v33
    %v84 = vunpack.c.l.b16 %v34
    %v85 = vpack.c.b16 %v78, %v77
    %v86 = vpack.c.b16 %v80, %v79
    %v87 = vpack.c.b16 %v82, %v81
    %v88 = vpack.c.b16 %v84, %v83
    %vm93 = vcmask 523264
    %v95 = vsel %vm93, %v67, 0
    %v98 = vsel %vm93, %v68, 0
    %100 = vmatprep.subr.bf16.mxu0 0
    %101 = vmatpush1.bf16.msra.mxu0 %v85
    %102 = vmatprep.subr.bf16.mxu0 0
    %103 = vmatpush1.bf16.msra.mxu0 %v86
    %104 = vmatprep.subr.bf16.mxu0 0
    %105 = vmatpush1.bf16.msra.mxu0 %v87
    %106 = vmatprep.subr.bf16.mxu0 0
    %107 = vmatpush1.bf16.msra.mxu0 %v88
    %108 = vmatprep.subr.bf16.mxu0 0
    %109 = vmatpush1.bf16.msra.mxu0 0
    %110 = vmatprep.subr.bf16.mxu0 0
    %111 = vmatpush1.bf16.msra.mxu0 0
    %112 = vmatprep.subr.bf16.mxu0 0
    %113 = vmatpush1.bf16.msra.mxu0 0
    %114 = vmatprep.subr.bf16.mxu0 0
    %115 = vmatpush1.bf16.msra.mxu0 0
    %116 = vmatprep.subr.bf16.mxu0 0
    %117 = vmatpush1.bf16.msra.mxu0 0
    %118 = vmatprep.subr.bf16.mxu0 0
    %119 = vmatpush1.bf16.msra.mxu0 0
    %120 = vmatprep.subr.bf16.mxu0 0
    %121 = vmatpush1.bf16.msra.mxu0 0
    %122 = vmatprep.subr.bf16.mxu0 0
    %123 = vmatpush1.bf16.msra.mxu0 0
    %124 = vmatprep.subr.bf16.mxu0 0
    %125 = vmatpush1.bf16.msra.mxu0 0
    %126 = vmatprep.subr.bf16.mxu0 0
    %127 = vmatpush1.bf16.msra.mxu0 0
    %128 = vmatprep.subr.bf16.mxu0 0
    %129 = vmatpush1.bf16.msra.mxu0 0
    %130 = vmatprep.subr.bf16.mxu0 0
    %131 = vmatpush1.bf16.msra.mxu0 0
    %132 = vmatprep.mubr.bf16.mxu0 0
    %133 = vmatmul.mubr.bf16.gmra.mrb[0].mxu0 %v95
    %v134 = vpop.f32.mrb[0].mxu0
    %v135 = vadd.f32 %v42, %v134
    %v136 = vpop.f32.mrb[0].mxu0
    %v137 = vpop.f32.mrb[0].mxu0
    %v138 = vadd.f32 %v47, %v137
    %v139 = vpop.f32.mrb[0].mxu0
    %140 = vmatprep.mubr.bf16.mxu0 0
    %141 = vmatmul.mubr.bf16.gmra.mrb[0].mxu0 %v98
    %v142 = vpop.f32.mrb[0].mxu0
    %v143 = vadd.f32 %v52, %v142
    %v144 = vpop.f32.mrb[0].mxu0
    %v145 = vpop.f32.mrb[0].mxu0
    %v146 = vadd.f32 %v57, %v145
    %v147 = vpop.f32.mrb[0].mxu0
    %148 = vdwg.mxu0
    %v149 = vmax.f32 %v135, 0.0
    %v150 = vmax.f32 %v138, 0.0
    %v151 = vmax.f32 %v143, 0.0
    %v152 = vmax.f32 %v146, 0.0
    %v153 = vld [vmem:[%s3] sm:$0xff]
    %v154 = vld [vmem:[%s3 + $0x8] sm:$0xff]
    %v155 = vld [vmem:[%s3 + $0x10] sm:$0xff]
    %v156 = vld [vmem:[%s3 + $0x18] sm:$0xff]
    %158 = vset.pattern.permute.xlu0 0
    %159 = vperm.xlu0 %158, %v153
    %v160 = vpop.permute.xlu0 %159
    %163 = vset.pattern.permute.xlu0 0
    %164 = vperm.xlu0 %163, %v154
    %v165 = vpop.permute.xlu0 %164
    %168 = vset.pattern.permute.xlu0 0
    %169 = vperm.xlu0 %168, %v155
    %v170 = vpop.permute.xlu0 %169
    %173 = vset.pattern.permute.xlu0 0
    %174 = vperm.xlu0 %173, %v156
    %v175 = vpop.permute.xlu0 %174
    %v177 = vmul.f32 %v149, %v160
    %v178 = vmul.f32 %v150, %v165
    %v179 = vmul.f32 %v151, %v170
    %v180 = vmul.f32 %v152, %v175
    %v181 = vadd.f32 %v177, %v178
    %v182 = vadd.f32 %v181, %v179
    %v183 = vadd.f32 %v182, %v180
    %v184 = vrot.slane %v183, 4
    %v185 = vadd.f32 %v183, %v184
    %v186 = vrot.slane %v185, 2
    %v187 = vadd.f32 %v185, %v186
    %v188 = vrot.slane %v187, 1
    %v189 = vadd.f32 %v187, %v188
    %s190 = sld [smem:[#allocation2]]
    %v191 = vstv %s190
    %v192 = vadd.f32 %v189, %v191
    %193 = vst [vmem:[#allocation3] sm:$0x1] %v192
    // Predicated region
    $region22: #{tpu_custom_call.1} parent=1 // pred_check
      _
    $region23: #{tpu_custom_call.1} parent=1 // pred_check_branch
      %195 = sbr.rel (0) target = $region25
    $region24: #{tpu_custom_call.1} parent=1 // pred_region
      %s197 = ssub.s32 16, 16
      %198 = vsyncadd [#allocation4], %s197
      %s200 = sshll.u32 [#allocation3], 4
      %s201 = int_to_ptr.vmem [resolvable:$true] %s200
      %203 = dma.vmem_to_hbm [thread:$0]  %s201, 16, %s5, [#allocation4]
    $region25: #{tpu_custom_call.1} parent=1 // pred_fallthru
      _
    // Predicated region
    $region26: #{tpu_custom_call.1} parent=1 // pred_check
      _
    $region27: #{tpu_custom_call.1} parent=1 // pred_check_branch
      %205 = sbr.rel (0) target = $region29
    $region28: #{tpu_custom_call.1} parent=1 // pred_region
      %206 = dma.done [#allocation4], 16
    $region29: #{tpu_custom_call.1} parent=1 // pred_fallthru
      _
    %207 = vsyncpa [#allocation4], 1

</llo_original>
